<compile_context>
chip_gen: v7x
topology: tpu7x:2x2x1
jax: 0.10.0
libtpu: 0.0.40
codegen_flags: <defaults>
</compile_context>

<pallas_src>
import math
import jax
import jax.numpy as jnp
from jax.experimental import pallas as pl
from jax.experimental.pallas import tpu as pltpu


def token_embedding_kernel(x_ref, w_ref, b_ref, o_ref):
    # x_ref: (TM, Kp) input dtype, w_ref: (Kp, Dp) bf16, b_ref: (1, Dp) bf16,
    # o_ref: (TM, Dp) bf16.
    x = x_ref[...].astype(jnp.bfloat16)                        # no-op if caller passes bf16
    acc = jnp.dot(x, w_ref[...], preferred_element_type=jnp.float32)  # MXU, f32 accumulate
    acc = acc + b_ref[...].astype(jnp.float32)                 # broadcast bias over rows
    o_ref[...] = acc.astype(o_ref.dtype)                       # cast back to bf16


def _round_up(a, b):
    return pl.cdiv(a, b) * b


def _default_tile_rows():
    # v5e has a 16 MiB scoped-VMEM default -> keep blocks smaller; v6e/v7x default 32 MiB.
    try:
        kind = jax.devices()[0].device_kind.lower()
    except Exception:
        return 2048
    return 2048 if "v5" in kind else 4096


def token_embedding(x, weight_t, bias, *, tm_rows=None):
    """x: (B, num_patches, patch_len) input (f32 accepted; bf16 preferred to halve reads).
    weight_t: (patch_len, d_model) bf16 (transposed nn.Linear weight).
    bias: (d_model,) bf16.
    Returns (B, num_patches, d_model) bf16, matching the PyTorch forward semantics."""
    B, num_patches, patch_len = x.shape
    d_model = weight_t.shape[1]
    M = B * num_patches

    # Lane-packing factor: stack `pack` consecutive rows into one 128-wide packed row.
    pack = 128 // patch_len if (patch_len <= 128 and 128 % patch_len == 0) else 1
    Kp = pack * patch_len            # packed contraction dim (128 when pack > 1)
    Dp = pack * d_model              # packed output dim (multiple of 128 when pack > 1)

    x2 = x.reshape(M, patch_len)
    Mp = pl.cdiv(M, pack)            # packed row count
    Mr = Mp * pack
    if Mr != M:
        # Ragged tail only: pad the last packed row. The common divisible case is copy-free.
        x2 = jnp.pad(x2, ((0, Mr - M), (0, 0)))
    x_packed = x2.reshape(Mp, Kp)                              # free row-major reshape

    if pack > 1:
        # Block-diagonal weight: block (j, j) == weight_t, so packed row @ w_packed gives
        # the `pack` original outputs laid contiguously along the lane axis.
        w_packed = jnp.kron(jnp.eye(pack, dtype=weight_t.dtype), weight_t)
        b_packed = jnp.tile(bias.reshape(1, d_model), (1, pack))
    else:
        w_packed = weight_t
        b_packed = bias.reshape(1, d_model)
    w_packed = w_packed.astype(jnp.bfloat16)
    b_packed = b_packed.astype(jnp.bfloat16)

    # M-tile: big chip-appropriate tile (multiple of 8), capped at ~Mp/2 so there are
    # always >= 2 grid steps for megacore sharding when Mp is large enough.
    if tm_rows is None:
        tm_rows = _default_tile_rows()
    if Mp <= 8:
        tm = Mp                                                # single exact block
    else:
        half = _round_up(pl.cdiv(Mp, 2), 8)
        tm = max(8, min((tm_rows // 8) * 8, half))
    grid_m = pl.cdiv(Mp, tm)                                   # partial last block handled by Pallas

    x_bytes = Mp * Kp * jnp.dtype(x_packed.dtype).itemsize
    param_bytes = (w_packed.size + b_packed.size) * 2
    out_bytes = Mp * Dp * 2
    cost = pl.CostEstimate(
        flops=2 * M * patch_len * d_model,                     # useful FLOPs only
        transcendentals=0,
        bytes_accessed=x_bytes + param_bytes + out_bytes,
    )

    out = pl.pallas_call(
        token_embedding_kernel,
        out_shape=jax.ShapeDtypeStruct((Mp, Dp), jnp.bfloat16),
        grid=(grid_m,),
        in_specs=[
            pl.BlockSpec((tm, Kp), lambda i: (i, 0)),
            pl.BlockSpec((Kp, Dp), lambda i: (0, 0)),          # resident weight
            pl.BlockSpec((1, Dp), lambda i: (0, 0)),           # resident bias
        ],
        out_specs=pl.BlockSpec((tm, Dp), lambda i: (i, 0)),
        compiler_params=pltpu.CompilerParams(
            dimension_semantics=("parallel",)),
        cost_estimate=cost,
    )(x_packed, w_packed, b_packed)

    out = out.reshape(Mr, d_model)
    if Mr != M:
        out = out[:M]                                          # only on the ragged path
    return out.reshape(B, num_patches, d_model)


if __name__ == "__main__":
    # Small shapes consistent with the module's forward: (B, num_patches, patch_len)
    B, num_patches, patch_len, d_model = 2, 8, 16, 32

    key = jax.random.PRNGKey(0)
    kx, kw, kb = jax.random.split(key, 3)

    # Deterministic parameter init mimicking nn.Linear(patch_len, d_model) default init,
    # cast to bf16 as in the PyTorch module.
    bound = 1.0 / math.sqrt(patch_len)
    weight = jax.random.uniform(kw, (d_model, patch_len), jnp.float32, -bound, bound)
    bias = jax.random.uniform(kb, (d_model,), jnp.float32, -bound, bound)
    weight_t = weight.T.astype(jnp.bfloat16)                   # (patch_len, d_model)
    bias_bf16 = bias.astype(jnp.bfloat16)                      # (d_model,)

    x = jax.random.normal(kx, (B, num_patches, patch_len), jnp.float32)

    out = token_embedding(x, weight_t, bias_bf16)
    out = jax.block_until_ready(out)

    # Reference check in plain JAX (same bf16 semantics: cast x -> bf16, f32 accumulate).
    ref = (jnp.dot(x.astype(jnp.bfloat16).reshape(-1, patch_len), weight_t,
                   preferred_element_type=jnp.float32)
           + bias_bf16.astype(jnp.float32)).astype(jnp.bfloat16)
    ref = ref.reshape(B, num_patches, d_model)

    assert out.shape == (B, num_patches, d_model)
    assert out.dtype == jnp.bfloat16
    assert jnp.allclose(out.astype(jnp.float32), ref.astype(jnp.float32),
                        atol=1e-2, rtol=1e-2)

    # bf16-input fast path (halved read bandwidth) must give the same result.
    out_bf16_in = jax.block_until_ready(
        token_embedding(x.astype(jnp.bfloat16), weight_t, bias_bf16))
    assert jnp.allclose(out_bf16_in.astype(jnp.float32), ref.astype(jnp.float32),
                        atol=1e-2, rtol=1e-2)

    print("KERNEL_OK")
</pallas_src>

<mosaic_0001>
module attributes {stable_mosaic.version = 11 : i64} {
  func.func @token_embedding_kernel(%arg0: i32, %arg1: memref<2x128xf32, #tpu.memory_space<vmem>>, %arg2: memref<128x256xbf16, #tpu.memory_space<vmem>>, %arg3: memref<1x256xbf16, #tpu.memory_space<vmem>>, %arg4: memref<2x256xbf16, #tpu.memory_space<vmem>>) attributes {dimension_semantics = [#tpu.dimension_semantics<parallel>], iteration_bounds = array<i64: 1>, scalar_prefetch = 0 : i64, scratch_operands = 0 : i64, tpu.core_type = #tpu.core_type<tc>, window_params = [{transform_indices = @transform_0, window_bounds = array<i64: 2, 128>}, {pipeline_mode = #tpu.pipeline_mode<synchronous>, transform_indices = @transform_1, window_bounds = array<i64: 128, 256>}, {pipeline_mode = #tpu.pipeline_mode<synchronous>, transform_indices = @transform_2, window_bounds = array<i64: 1, 256>}, {transform_indices = @transform_3, window_bounds = array<i64: 2, 256>}]} {
    %c0 = arith.constant 0 : index
    %c0_0 = arith.constant 0 : index
    %0 = vector.load %arg1[%c0, %c0_0] : memref<2x128xf32, #tpu.memory_space<vmem>>, vector<2x128xf32>
    %1 = arith.truncf %0 : vector<2x128xf32> to vector<2x128xbf16>
    %c0_1 = arith.constant 0 : index
    %c0_2 = arith.constant 0 : index
    %2 = vector.load %arg2[%c0_1, %c0_2] : memref<128x256xbf16, #tpu.memory_space<vmem>>, vector<128x256xbf16>
    %cst = arith.constant dense<0.000000e+00> : vector<2x256xf32>
    %3 = tpu.matmul %1, %2, %cst {dimension_numbers = #tpu.dot_dimension_numbers<[1], [0], [0], [1], [0, 0, 1, 1], [], []>} : vector<2x128xbf16>, vector<128x256xbf16>, vector<2x256xf32> -> vector<2x256xf32>
    %c0_3 = arith.constant 0 : index
    %c0_4 = arith.constant 0 : index
    %4 = vector.load %arg3[%c0_3, %c0_4] : memref<1x256xbf16, #tpu.memory_space<vmem>>, vector<1x256xbf16>
    %5 = arith.extf %4 : vector<1x256xbf16> to vector<1x256xf32>
    %6 = vector.broadcast %5 : vector<1x256xf32> to vector<2x256xf32>
    %7 = arith.addf %3, %6 : vector<2x256xf32>
    %8 = arith.truncf %7 : vector<2x256xf32> to vector<2x256xbf16>
    %c0_5 = arith.constant 0 : index
    %c0_6 = arith.constant 0 : index
    %9 = vector.load %arg4[%c0_5, %c0_6] : memref<2x256xbf16, #tpu.memory_space<vmem>>, vector<2x256xbf16>
    tpu.vector_store %arg4[%c0_5, %c0_6], %8 {strides = array<i32>} : memref<2x256xbf16, #tpu.memory_space<vmem>>, vector<2x256xbf16>,
    return
  }
  func.func @transform_0(%arg0: i32) -> (i32, i32) {
    %c0_i32 = arith.constant 0 : i32
    %c0_i32_0 = arith.constant 0 : i32
    return %arg0, %c0_i32 : i32, i32
  }
  func.func @transform_1(%arg0: i32) -> (i32, i32) {
    %c0_i32 = arith.constant 0 : i32
    %c0_i32_0 = arith.constant 0 : i32
    %c0_i32_1 = arith.constant 0 : i32
    return %c0_i32, %c0_i32_0 : i32, i32
  }
  func.func @transform_2(%arg0: i32) -> (i32, i32) {
    %c0_i32 = arith.constant 0 : i32
    %c0_i32_0 = arith.constant 0 : i32
    %c0_i32_1 = arith.constant 0 : i32
    return %c0_i32, %c0_i32_0 : i32, i32
  }
  func.func @transform_3(%arg0: i32) -> (i32, i32) {
    %c0_i32 = arith.constant 0 : i32
    %c0_i32_0 = arith.constant 0 : i32
    return %arg0, %c0_i32 : i32, i32
  }
}

</mosaic_0001>

<llo_original>
// kernel: tpu_custom_call.1
$region0: #{tpu_custom_call.1}
  #allocation0 [shape = 'u32[]', space=smem, size = 0x4, offset = 0x4, fixed_abs, tag = 'smem constant byte address 0x4 - core index']
  #allocation1 [shape = 'u32[144,128]{1,0:T(1,128)}', space=vmem, size = 0x12000, scoped, tag = 'internal scratch']
  %s0 = inlined_call_operand.hbm [shape: f32[2,128], index: 0, kind: input, shape index: {}]
  %s1 = inlined_call_operand.hbm [shape: bf16[128,256], index: 1, kind: input, shape index: {}]
  %s2 = inlined_call_operand.vmem [shape: bf16[1,256], index: 2, kind: input, shape index: {}]
  %s3 = inlined_call_operand.hbm [shape: bf16[2,256], index: 3, kind: output, shape index: {}]
  %s4 = sld [smem:[#allocation0]]
  $region30: #{tpu_custom_call.1} parent=0
    _
  %s6 = ssub.s32 1, %s4
  %s7 = scalar_select 0, %s6, %s4
  $region1: #{tpu_custom_call.1} parent=0
    #allocation2 [shape = 'u8[1024]{0}', space=vmem, size = 0x400, scoped, tag = 'input window, operand 0, single buffered']
    #allocation3 [shape = 's32[1]{0}', space=sflag, size = 0x4, scoped, tag = 'scoped memory for tpu_custom_call.1']
    #allocation4 [shape = 's32[1]{0}', space=sflag, size = 0x4, scoped, tag = 'scoped memory for tpu_custom_call.1']
    #allocation5 [shape = 'u8[65536]{0}', space=vmem, size = 0x10000, scoped, tag = 'input window, operand 1, single buffered']
    #allocation6 [shape = 's32[1]{0}', space=sflag, size = 0x4, scoped, tag = 'scoped memory for tpu_custom_call.1']
    #allocation7 [shape = 'u8[1024]{0}', space=vmem, size = 0x400, scoped, tag = 'output window, operand 0, single buffered']
    %8 = vsyncpa [#allocation3], 0
    %9 = vsyncpa [#allocation6], 0
    %10 = vsyncpa [#allocation4], 0
    // Predicated region
    $region2: #{tpu_custom_call.1} parent=1 // pred_check
      _
    $region3: #{tpu_custom_call.1} parent=1 // pred_check_branch
      %12 = sbr.rel (0) target = $region5
    $region4: #{tpu_custom_call.1} parent=1 // pred_region
      %s14 = ssub.s32 32, 32
      %15 = vsyncadd [#allocation3], %s14
      %s17 = sshll.u32 [#allocation2], 4
      %s18 = int_to_ptr.vmem [resolvable:$true] %s17
      %20 = dma.hbm_to_vmem [thread:$0]  %s0, 32, %s18, [#allocation3]
    $region5: #{tpu_custom_call.1} parent=1 // pred_fallthru
      _
    // Predicated region
    $region6: #{tpu_custom_call.1} parent=1 // pred_check
      _
    $region7: #{tpu_custom_call.1} parent=1 // pred_check_branch
      %22 = sbr.rel (0) target = $region9
    $region8: #{tpu_custom_call.1} parent=1 // pred_region
      %s24 = ssub.s32 2048, 2048
      %25 = vsyncadd [#allocation6], %s24
      %s26 = sshll.u32 [#allocation5], 4
      %s27 = int_to_ptr.vmem [resolvable:$true] %s26
      %32 = dma.hbm_to_vmem [thread:$0]  %s1, 2048, %s27, [#allocation6], 128, 128, 8
    $region9: #{tpu_custom_call.1} parent=1 // pred_fallthru
      _
    // Predicated region
    $region10: #{tpu_custom_call.1} parent=1 // pred_check
      _
    $region11: #{tpu_custom_call.1} parent=1 // pred_check_branch
      %34 = sbr.rel (0) target = $region13
    $region12: #{tpu_custom_call.1} parent=1 // pred_region
      _
    $region13: #{tpu_custom_call.1} parent=1 // pred_fallthru
      _
    // Predicated region
    $region14: #{tpu_custom_call.1} parent=1 // pred_check
      _
    $region15: #{tpu_custom_call.1} parent=1 // pred_check_branch
      %36 = sbr.rel (0) target = $region17
    $region16: #{tpu_custom_call.1} parent=1 // pred_region
      %37 = dma.done [#allocation3], 32
    $region17: #{tpu_custom_call.1} parent=1 // pred_fallthru
      _
    // Predicated region
    $region18: #{tpu_custom_call.1} parent=1 // pred_check
      _
    $region19: #{tpu_custom_call.1} parent=1 // pred_check_branch
      %39 = sbr.rel (0) target = $region21
    $region20: #{tpu_custom_call.1} parent=1 // pred_region
      %40 = dma.done [#allocation6], 2048
    $region21: #{tpu_custom_call.1} parent=1 // pred_fallthru
      _
    %v42 = vld [vmem:[#allocation2] sm:$0x3]
    %v43 = vpack.c.bf16 %v42, %v42
    %v44 = vld [vmem:[#allocation5] sm:$0xff]
    %v45 = vld [vmem:[#allocation5 + $0x8] sm:$0xff]
    %v46 = vld [vmem:[#allocation5 + $0x10] sm:$0xff]
    %v47 = vld [vmem:[#allocation5 + $0x18] sm:$0xff]
    %v48 = vld [vmem:[#allocation5 + $0x20] sm:$0xff]
    %v49 = vld [vmem:[#allocation5 + $0x28] sm:$0xff]
    %v50 = vld [vmem:[#allocation5 + $0x30] sm:$0xff]
    %v51 = vld [vmem:[#allocation5 + $0x38] sm:$0xff]
    %v52 = vld [vmem:[#allocation5 + $0x40] sm:$0xff]
    %v53 = vld [vmem:[#allocation5 + $0x48] sm:$0xff]
    %v54 = vld [vmem:[#allocation5 + $0x50] sm:$0xff]
    %v55 = vld [vmem:[#allocation5 + $0x58] sm:$0xff]
    %v56 = vld [vmem:[#allocation5 + $0x60] sm:$0xff]
    %v57 = vld [vmem:[#allocation5 + $0x68] sm:$0xff]
    %v58 = vld [vmem:[#allocation5 + $0x70] sm:$0xff]
    %v59 = vld [vmem:[#allocation5 + $0x78] sm:$0xff]
    %v60 = vld [vmem:[%s2] sm:$0x3]
    %v61 = vunpack.c.l.bf16 %v60
    %v63 = vlaneseq
    %v64 = vshrl.u32 %v63, 7
    %v65 = vsub.s32 0, %v64
    %v66 = vrot.slane %v61, %v65
    %v67 = vlaneseq
    %v68 = vshrl.u32 %v67, 7
    %v69 = vsub.s32 2, %v68
    %v70 = vrot.slane %v61, %v69
    %v73 = vlaneseq
    %v74 = vshrl.u32 %v73, 7
    %v75 = vsub.s32 0, %v74
    %v76 = vrot.slane %v66, %v75
    %v77 = vlaneseq
    %v78 = vshrl.u32 %v77, 7
    %v79 = vsub.s32 0, %v78
    %v80 = vrot.slane %v70, %v79
    %v97 = vunpack.c.l.b16 %v44
    %v98 = vunpack.c.h.b16 %v44
    %v99 = vunpack.c.l.b16 %v45
    %v100 = vunpack.c.h.b16 %v45
    %v101 = vunpack.c.l.b16 %v46
    %v102 = vunpack.c.h.b16 %v46
    %v103 = vunpack.c.l.b16 %v47
    %v104 = vunpack.c.h.b16 %v47
    %v105 = vunpack.c.l.b16 %v48
    %v106 = vunpack.c.h.b16 %v48
    %v107 = vunpack.c.l.b16 %v49
    %v108 = vunpack.c.h.b16 %v49
    %v109 = vunpack.c.l.b16 %v50
    %v110 = vunpack.c.h.b16 %v50
    %v111 = vunpack.c.l.b16 %v51
    %v112 = vunpack.c.h.b16 %v51
    %v113 = vunpack.c.l.b16 %v52
    %v114 = vunpack.c.h.b16 %v52
    %v115 = vunpack.c.l.b16 %v53
    %v116 = vunpack.c.h.b16 %v53
    %v117 = vunpack.c.l.b16 %v54
    %v118 = vunpack.c.h.b16 %v54
    %v119 = vunpack.c.l.b16 %v55
    %v120 = vunpack.c.h.b16 %v55
    %v121 = vunpack.c.l.b16 %v56
    %v122 = vunpack.c.h.b16 %v56
    %v123 = vunpack.c.l.b16 %v57
    %v124 = vunpack.c.h.b16 %v57
    %v125 = vunpack.c.l.b16 %v58
    %v126 = vunpack.c.h.b16 %v58
    %v127 = vunpack.c.l.b16 %v59
    %v128 = vunpack.c.h.b16 %v59
    %v129 = vpack.c.b16 %v99, %v97
    %v130 = vpack.c.b16 %v100, %v98
    %v131 = vpack.c.b16 %v103, %v101
    %v132 = vpack.c.b16 %v104, %v102
    %v133 = vpack.c.b16 %v107, %v105
    %v134 = vpack.c.b16 %v108, %v106
    %v135 = vpack.c.b16 %v111, %v109
    %v136 = vpack.c.b16 %v112, %v110
    %v137 = vpack.c.b16 %v115, %v113
    %v138 = vpack.c.b16 %v116, %v114
    %v139 = vpack.c.b16 %v119, %v117
    %v140 = vpack.c.b16 %v120, %v118
    %v141 = vpack.c.b16 %v123, %v121
    %v142 = vpack.c.b16 %v124, %v122
    %v143 = vpack.c.b16 %v127, %v125
    %v144 = vpack.c.b16 %v128, %v126
    %161 = vmatprep.subr.bf16.mxu0 %v130
    %162 = vmatpush1.bf16.msra.mxu0 %v129
    %163 = vmatprep.subr.bf16.mxu0 %v132
    %164 = vmatpush1.bf16.msra.mxu0 %v131
    %165 = vmatprep.subr.bf16.mxu0 %v134
    %166 = vmatpush1.bf16.msra.mxu0 %v133
    %167 = vmatprep.subr.bf16.mxu0 %v136
    %168 = vmatpush1.bf16.msra.mxu0 %v135
    %169 = vmatprep.subr.bf16.mxu0 %v138
    %170 = vmatpush1.bf16.msra.mxu0 %v137
    %171 = vmatprep.subr.bf16.mxu0 %v140
    %172 = vmatpush1.bf16.msra.mxu0 %v139
    %173 = vmatprep.subr.bf16.mxu0 %v142
    %174 = vmatpush1.bf16.msra.mxu0 %v141
    %175 = vmatprep.subr.bf16.mxu0 %v144
    %176 = vmatpush1.bf16.msra.mxu0 %v143
    %177 = vmatprep.subr.bf16.mxu0 0
    %178 = vmatpush1.bf16.msra.mxu0 0
    %179 = vmatprep.subr.bf16.mxu0 0
    %180 = vmatpush1.bf16.msra.mxu0 0
    %181 = vmatprep.subr.bf16.mxu0 0
    %182 = vmatpush1.bf16.msra.mxu0 0
    %183 = vmatprep.subr.bf16.mxu0 0
    %184 = vmatpush1.bf16.msra.mxu0 0
    %185 = vmatprep.subr.bf16.mxu0 0
    %186 = vmatpush1.bf16.msra.mxu0 0
    %187 = vmatprep.subr.bf16.mxu0 0
    %188 = vmatpush1.bf16.msra.mxu0 0
    %189 = vmatprep.subr.bf16.mxu0 0
    %190 = vmatpush1.bf16.msra.mxu0 0
    %191 = vmatprep.subr.bf16.mxu0 0
    %192 = vmatpush1.bf16.msra.mxu0 0
    %193 = vmatprep.mubr.bf16.mxu0 0
    %194 = vmatmul.mubr.bf16.gmra.mrb[0].mxu0 %v43
    %v195 = vpop.f32.mrb[0].mxu0
    %v196 = vadd.f32 %v76, %v195
    %v197 = vpop.f32.mrb[0].mxu0
    %v198 = vadd.f32 %v80, %v197
    %v199 = vpop.f32.mrb[0].mxu0
    %v200 = vpop.f32.mrb[0].mxu0
    %201 = vdwg.mxu0
    %v202 = vpack.c.bf16 %v196, %v196
    %v203 = vpack.c.bf16 %v198, %v198
    %v206 = vcombine.low %v202, %v203
    %v208 = vunpack.c.l.s4 1966171168
    %v209 = vunpack.c.0.s8 %v208
    %v210 = vlaneseq
    %v211 = vshrl.u32 %v210, 7
    %v212 = vsub.s32 %v209, %v211
    %v213 = vrot.slane %v206, %v212
    %v215 = vunpack.c.l.s4 1966171168
    %v216 = vunpack.c.0.s8 %v215
    %v217 = vlaneseq
    %v218 = vshrl.u32 %v217, 7
    %v219 = vsub.s32 %v216, %v218
    %v220 = vrot.slane %v213, %v219
    %222 = vst [vmem:[#allocation7] sm:$0x3] %v220
    // Predicated region
    $region22: #{tpu_custom_call.1} parent=1 // pred_check
      _
    $region23: #{tpu_custom_call.1} parent=1 // pred_check_branch
      %224 = sbr.rel (0) target = $region25
    $region24: #{tpu_custom_call.1} parent=1 // pred_region
      %s226 = ssub.s32 32, 32
      %227 = vsyncadd [#allocation4], %s226
      %s229 = sshll.u32 [#allocation7], 4
      %s230 = int_to_ptr.vmem [resolvable:$true] %s229
      %232 = dma.vmem_to_hbm [thread:$0]  %s230, 32, %s3, [#allocation4]
    $region25: #{tpu_custom_call.1} parent=1 // pred_fallthru
      _
    // Predicated region
    $region26: #{tpu_custom_call.1} parent=1 // pred_check
      _
    $region27: #{tpu_custom_call.1} parent=1 // pred_check_branch
      %234 = sbr.rel (0) target = $region29
    $region28: #{tpu_custom_call.1} parent=1 // pred_region
      %235 = dma.done [#allocation4], 32
    $region29: #{tpu_custom_call.1} parent=1 // pred_fallthru
      _
    %236 = vsyncpa [#allocation3], 1
    %237 = vsyncpa [#allocation6], 1
    %238 = vsyncpa [#allocation4], 1

</llo_original>
